<compile_context>
chip_gen: v7x
topology: tpu7x:2x2x1
jax: 0.10.0
libtpu: 0.0.40
codegen_flags: <defaults>
</compile_context>

<pallas_src>
import jax
import jax.numpy as jnp
from jax.experimental import pallas as pl
from jax.experimental.pallas import tpu as pltpu


# ----------------------------- kernel ---------------------------------------


def _gaussian_kernel(x_ref, w1_ref, b1_ref, w2_ref, b2_ref, noise_ref, out_ref):
    """One batch tile of the fused 2-branch MLP + reparameterization.

    Writes a packed [TB, 3*OUT] slab: [ mu | logvar | z ].
    """
    out_dim = noise_ref.shape[-1]

    x = x_ref[...]

    # Layer 1, both branches at once: [TB, IN] @ [IN, 2*hid] + [1, 2*hid].
    # preferred_element_type keeps the MXU accumulating in f32 even when the
    # operands are bf16 (v6e / v7x fast path).
    h = jnp.dot(x, w1_ref[...], preferred_element_type=jnp.float32) + b1_ref[...]
    # LeakyReLU(0.1): slope < 1 so max(h, 0.1*h) == where(h > 0, h, 0.1*h),
    # one fewer VALU op (drops the compare+select).
    h = jnp.maximum(h, 0.1 * h)

    # Layer 2, block-diagonal: [TB, 2*hid] @ [2*hid, 2*OUT]  ->  y = [mu|logvar]
    y = (
        jnp.dot(h.astype(w2_ref.dtype), w2_ref[...],
                preferred_element_type=jnp.float32)
        + b2_ref[...]
    )

    mu = y[:, :out_dim]
    logvar = y[:, out_dim:]

    # Reparameterization trick (exp lands on the EUP slot).
    z = mu + noise_ref[...] * jnp.exp(0.5 * logvar)

    # Direct sub-slice stores into the packed output slab (no concatenate ->
    # no extra [TB, 3*OUT] VMEM temp or XLU lane shuffle).
    out_ref[:, : 2 * out_dim] = y.astype(out_ref.dtype)
    out_ref[:, 2 * out_dim :] = z.astype(out_ref.dtype)


# ----------------------------- tiling helpers --------------------------------

# Conservative scoped-VMEM budget that is safe on every generation
# (v7x: 64 MiB physical / 32 MiB scoped default).
_DEFAULT_VMEM_BUDGET = 32 * 1024 * 1024


def _round_up(x, m):
    return ((x + m - 1) // m) * m


def _pick_batch_tile(batch, target, min_grid_steps=2):
    """Largest multiple-of-8 batch tile <= target, capped so the grid has at
    least `min_grid_steps` steps (lets v7x shard the 'parallel' batch axis
    across its two TensorCores; harmless on single-TC v5e/v6e)."""
    if batch <= 8:
        return batch  # full-extent block; no (8, .) constraint applies
    cap = _round_up(max(8, -(-batch // min_grid_steps)), 8)
    tb = min(_round_up(batch, 8), _round_up(target, 8), cap)
    return max(8, (tb // 8) * 8)


def _vmem_estimate_bytes(tb, in_dim, hid2, out_dim, w_itemsize, x_itemsize):
    """Per-step VMEM footprint: single-buffered params + double-buffered streams."""
    params = (in_dim * hid2 + hid2 * 2 * out_dim) * w_itemsize + (hid2 + 2 * out_dim) * 4
    streams = 2 * tb * (in_dim * x_itemsize + out_dim * 4 + 3 * out_dim * 4)
    return params + streams


# ----------------------------- wrapper ---------------------------------------


def gaussian_forward(x, fused, noise, *, batch_tile=1024,
                     compute_dtype=jnp.float32,
                     vmem_budget_bytes=_DEFAULT_VMEM_BUDGET):
    """Runs the Gaussian layer forward pass. Returns (mu, logvar, z).

    compute_dtype: dtype of the matmul operands (x, W1, W2). Accumulation,
    biases, the elementwise tail, and the output stay f32. Use jnp.bfloat16 on
    v6e / v7x for ~2x MXU throughput and half the dominant HBM stream when the
    accuracy loss is acceptable; keep f32 for bit-faithful module semantics.
    """
    B, in_dim = x.shape
    out_dim = noise.shape[-1]
    hid2 = fused["w1"].shape[1]  # 2 * (in_dim // 2)

    w_itemsize = jnp.dtype(compute_dtype).itemsize
    x_itemsize = w_itemsize

    tb = _pick_batch_tile(B, batch_tile)
    # Shrink the batch tile if the per-step footprint would blow VMEM.
    while tb > 8 and _vmem_estimate_bytes(
            tb, in_dim, hid2, out_dim, w_itemsize, x_itemsize) > vmem_budget_bytes:
        tb = max(8, ((tb // 2) // 8) * 8)
    if _vmem_estimate_bytes(tb, in_dim, hid2, out_dim,
                            w_itemsize, x_itemsize) > vmem_budget_bytes:
        # Resident fused W1 ([IN, 2*(IN//2)]) alone does not fit.
        # TODO(synk): for very large in_dim, tile the hid2/IN axes with an
        # "arbitrary" accumulator grid axis and/or store weights in bf16, and
        # raise vmem_limit_bytes explicitly via CompilerParams.
        raise ValueError(
            "Gaussian fused parameters exceed the VMEM budget "
            f"({vmem_budget_bytes / 2**20:.1f} MiB); reduce in_dim, use "
            "compute_dtype=jnp.bfloat16, or add K-tiling.")

    grid = (pl.cdiv(B, tb),)  # ragged last block is masked by Pallas

    tile_map = lambda i: (i, 0)      # batch-tiled streams
    resident_map = lambda i: (0, 0)  # parameters: same block every step

    # Parameters never change block -> single-buffer them (halves their VMEM
    # footprint at zero perf cost; matters most on v7x's smaller VMEM).
    param_mode = pl.Buffered(1)

    in_specs = [
        pl.BlockSpec((tb, in_dim), tile_map),                                      # x
        pl.BlockSpec((in_dim, hid2), resident_map, pipeline_mode=param_mode),      # fused W1
        pl.BlockSpec((1, hid2), resident_map, pipeline_mode=param_mode),           # fused b1
        pl.BlockSpec((hid2, 2 * out_dim), resident_map, pipeline_mode=param_mode), # block-diag W2
        pl.BlockSpec((1, 2 * out_dim), resident_map, pipeline_mode=param_mode),    # fused b2
        pl.BlockSpec((tb, out_dim), tile_map),                                     # noise
    ]
    out_specs = pl.BlockSpec((tb, 3 * out_dim), tile_map)
    out_shape = jax.ShapeDtypeStruct((B, 3 * out_dim), jnp.float32)

    flops = 2 * B * (in_dim * hid2 + hid2 * 2 * out_dim)
    bytes_accessed = (
        B * in_dim * x_itemsize + B * out_dim * 4 + B * 3 * out_dim * 4
        + (in_dim * hid2 + hid2 * 2 * out_dim) * w_itemsize
        + (hid2 + 2 * out_dim) * 4
    )
    cost = pl.CostEstimate(flops=int(flops), transcendentals=int(B * out_dim),
                           bytes_accessed=int(bytes_accessed))

    x_in = x.astype(compute_dtype)
    w1 = fused["w1"].astype(compute_dtype)
    w2 = fused["w2"].astype(compute_dtype)

    packed = pl.pallas_call(
        _gaussian_kernel,
        grid=grid,
        in_specs=in_specs,
        out_specs=out_specs,
        out_shape=out_shape,
        compiler_params=pltpu.CompilerParams(
            dimension_semantics=("parallel",),  # v7x: batch tiles across both TCs
        ),
        cost_estimate=cost,
    )(x_in, w1, fused["b1"], w2, fused["b2"], noise)

    mu = packed[:, :out_dim]
    logvar = packed[:, out_dim:2 * out_dim]
    z = packed[:, 2 * out_dim:]
    return mu, logvar, z


# ----------------------------- params ----------------------------------------


def init_params(key, in_dim, out_dim):
    """Mirror nn.Linear defaults (uniform +-1/sqrt(fan_in)); weights stored
    [in_features, out_features]; biases [1, out_features]. The var branch's
    final-layer *weight* is zeroed (nn.init.zeros_), as in the module."""
    hid = in_dim // 2
    ks = jax.random.split(key, 8)

    def lin(kw, kb, fan_in, fan_out):
        bound = 1.0 / jnp.sqrt(fan_in)
        w = jax.random.uniform(kw, (fan_in, fan_out), jnp.float32, -bound, bound)
        b = jax.random.uniform(kb, (1, fan_out), jnp.float32, -bound, bound)
        return w, b

    w1_mu, b1_mu = lin(ks[0], ks[1], in_dim, hid)
    w2_mu, b2_mu = lin(ks[2], ks[3], hid, out_dim)
    w1_var, b1_var = lin(ks[4], ks[5], in_dim, hid)
    w2_var, b2_var = lin(ks[6], ks[7], hid, out_dim)
    w2_var = jnp.zeros_like(w2_var)  # nn.init.zeros_(self.var[-1].weight)

    return dict(
        w1_mu=w1_mu, b1_mu=b1_mu, w2_mu=w2_mu, b2_mu=b2_mu,
        w1_var=w1_var, b1_var=b1_var, w2_var=w2_var, b2_var=b2_var,
    )


def fuse_params(p):
    """Build the fused / block-diagonal weights the kernel consumes (done once)."""
    hid = p["w1_mu"].shape[1]
    out_dim = p["w2_mu"].shape[1]

    w1 = jnp.concatenate([p["w1_mu"], p["w1_var"]], axis=1)  # [IN, 2*hid]
    b1 = jnp.concatenate([p["b1_mu"], p["b1_var"]], axis=1)  # [1, 2*hid]

    w2 = jnp.zeros((2 * hid, 2 * out_dim), jnp.float32)      # block-diagonal
    w2 = w2.at[:hid, :out_dim].set(p["w2_mu"])
    w2 = w2.at[hid:, out_dim:].set(p["w2_var"])
    b2 = jnp.concatenate([p["b2_mu"], p["b2_var"]], axis=1)  # [1, 2*OUT]

    return dict(w1=w1, b1=b1, w2=w2, b2=b2)


# ----------------------------- reference / test -------------------------------


def reference_forward(x, params, noise):
    """Plain-JAX reference for correctness checking."""
    def mlp(x, w1, b1, w2, b2):
        h = x @ w1 + b1
        h = jnp.where(h > 0, h, 0.1 * h)
        return h @ w2 + b2

    mu = mlp(x, params["w1_mu"], params["b1_mu"], params["w2_mu"], params["b2_mu"])
    logvar = mlp(x, params["w1_var"], params["b1_var"], params["w2_var"], params["b2_var"])
    z = mu + noise * jnp.exp(0.5 * logvar)
    return mu, logvar, z


if __name__ == "__main__":
    # Small shapes consistent with the module's [BatchSize, InputDim] input,
    # with enough rows for a >=2-step batch grid (2 tiles of 128).
    B, IN_DIM, OUT_DIM = 256, 32, 8

    key = jax.random.PRNGKey(0)
    k_x, k_p, k_n, k_w = jax.random.split(key, 4)

    x = jax.random.normal(k_x, (B, IN_DIM), jnp.float32)
    params = init_params(k_p, IN_DIM, OUT_DIM)
    # torch.randn_like(std) -> explicit, deterministic noise fed to the kernel.
    noise = jax.random.normal(k_n, (B, OUT_DIM), jnp.float32)

    # --- 1) module-faithful weights (var[-1].weight zero-initialized) ---------
    fused = fuse_params(params)
    mu, logvar, z = gaussian_forward(x, fused, noise)
    jax.block_until_ready((mu, logvar, z))
    mu_r, logvar_r, z_r = reference_forward(x, params, noise)
    assert jnp.allclose(mu, mu_r, atol=1e-5), "mu mismatch"
    assert jnp.allclose(logvar, logvar_r, atol=1e-5), "logvar mismatch"
    assert jnp.allclose(z, z_r, atol=1e-5), "z mismatch"

    # --- 2) nonzero var-branch layer-2 weight: exercises the block-diagonal ---
    #        fusion's logvar half (the module zero-inits it, so test separately).
    params_nz = dict(params)
    params_nz["w2_var"] = 0.1 * jax.random.normal(k_w, params["w2_var"].shape, jnp.float32)
    fused_nz = fuse_params(params_nz)
    mu2, logvar2, z2 = gaussian_forward(x, fused_nz, noise)
    jax.block_until_ready((mu2, logvar2, z2))
    mu2_r, logvar2_r, z2_r = reference_forward(x, params_nz, noise)
    assert jnp.allclose(mu2, mu2_r, atol=1e-5), "mu mismatch (nonzero w2_var)"
    assert jnp.allclose(logvar2, logvar2_r, atol=1e-5), "logvar mismatch (nonzero w2_var)"
    assert jnp.allclose(z2, z2_r, atol=1e-5), "z mismatch (nonzero w2_var)"

    # --- 3) ragged batch: grid = cdiv(B, tb), masked last block ---------------
    B3 = 200
    mu3, logvar3, z3 = gaussian_forward(x[:B3], fused_nz, noise[:B3])
    jax.block_until_ready((mu3, logvar3, z3))
    mu3_r, logvar3_r, z3_r = reference_forward(x[:B3], params_nz, noise[:B3])
    assert jnp.allclose(mu3, mu3_r, atol=1e-5), "mu mismatch (ragged batch)"
    assert jnp.allclose(logvar3, logvar3_r, atol=1e-5), "logvar mismatch (ragged batch)"
    assert jnp.allclose(z3, z3_r, atol=1e-5), "z mismatch (ragged batch)"

    # --- 4) bf16 matmul operands (f32 accumulate): v6e/v7x fast path ----------
    mu4, logvar4, z4 = gaussian_forward(x, fused_nz, noise, compute_dtype=jnp.bfloat16)
    jax.block_until_ready((mu4, logvar4, z4))
    assert jnp.allclose(mu4, mu2_r, atol=1e-1), "mu mismatch (bf16 operands)"
    assert jnp.allclose(logvar4, logvar2_r, atol=1e-1), "logvar mismatch (bf16 operands)"
    assert jnp.allclose(z4, z2_r, atol=1e-1), "z mismatch (bf16 operands)"

    print("KERNEL_OK")
</pallas_src>

<mosaic_0001>
module attributes {stable_mosaic.version = 11 : i64} {
  func.func @_gaussian_kernel(%arg0: i32, %arg1: memref<128x32xf32, #tpu.memory_space<vmem>>, %arg2: memref<32x32xf32, #tpu.memory_space<vmem>>, %arg3: memref<1x32xf32, #tpu.memory_space<vmem>>, %arg4: memref<32x16xf32, #tpu.memory_space<vmem>>, %arg5: memref<1x16xf32, #tpu.memory_space<vmem>>, %arg6: memref<128x8xf32, #tpu.memory_space<vmem>>, %arg7: memref<128x24xf32, #tpu.memory_space<vmem>>) attributes {dimension_semantics = [#tpu.dimension_semantics<parallel>], iteration_bounds = array<i64: 2>, scalar_prefetch = 0 : i64, scratch_operands = 0 : i64, tpu.core_type = #tpu.core_type<tc>, window_params = [{transform_indices = @transform_0, window_bounds = array<i64: 128, 32>}, {pipeline_mode = #tpu.pipeline_mode<synchronous>, transform_indices = @transform_1, window_bounds = array<i64: 32, 32>}, {pipeline_mode = #tpu.pipeline_mode<synchronous>, transform_indices = @transform_2, window_bounds = array<i64: 1, 32>}, {pipeline_mode = #tpu.pipeline_mode<synchronous>, transform_indices = @transform_3, window_bounds = array<i64: 32, 16>}, {pipeline_mode = #tpu.pipeline_mode<synchronous>, transform_indices = @transform_4, window_bounds = array<i64: 1, 16>}, {transform_indices = @transform_5, window_bounds = array<i64: 128, 8>}, {transform_indices = @transform_6, window_bounds = array<i64: 128, 24>}]} {
    %c0 = arith.constant 0 : index
    %c0_0 = arith.constant 0 : index
    %0 = vector.load %arg1[%c0, %c0_0] : memref<128x32xf32, #tpu.memory_space<vmem>>, vector<128x32xf32>
    %c0_1 = arith.constant 0 : index
    %c0_2 = arith.constant 0 : index
    %1 = vector.load %arg2[%c0_1, %c0_2] : memref<32x32xf32, #tpu.memory_space<vmem>>, vector<32x32xf32>
    %cst = arith.constant dense<0.000000e+00> : vector<128x32xf32>
    %2 = tpu.matmul %0, %1, %cst {dimension_numbers = #tpu.dot_dimension_numbers<[1], [0], [0], [1], [0, 0, 1, 1], [], []>} : vector<128x32xf32>, vector<32x32xf32>, vector<128x32xf32> -> vector<128x32xf32>
    %c0_3 = arith.constant 0 : index
    %c0_4 = arith.constant 0 : index
    %3 = vector.load %arg3[%c0_3, %c0_4] : memref<1x32xf32, #tpu.memory_space<vmem>>, vector<1x32xf32>
    %4 = vector.broadcast %3 : vector<1x32xf32> to vector<128x32xf32>
    %5 = arith.addf %2, %4 : vector<128x32xf32>
    %cst_5 = arith.constant 1.000000e-01 : f32
    %6 = vector.broadcast %cst_5 : f32 to vector<128x32xf32>
    %7 = arith.mulf %6, %5 : vector<128x32xf32>
    %8 = arith.maximumf %5, %7 : vector<128x32xf32>
    %c0_6 = arith.constant 0 : index
    %c0_7 = arith.constant 0 : index
    %9 = vector.load %arg4[%c0_6, %c0_7] : memref<32x16xf32, #tpu.memory_space<vmem>>, vector<32x16xf32>
    %cst_8 = arith.constant dense<0.000000e+00> : vector<128x16xf32>
    %10 = tpu.matmul %8, %9, %cst_8 {dimension_numbers = #tpu.dot_dimension_numbers<[1], [0], [0], [1], [0, 0, 1, 1], [], []>} : vector<128x32xf32>, vector<32x16xf32>, vector<128x16xf32> -> vector<128x16xf32>
    %c0_9 = arith.constant 0 : index
    %c0_10 = arith.constant 0 : index
    %11 = vector.load %arg5[%c0_9, %c0_10] : memref<1x16xf32, #tpu.memory_space<vmem>>, vector<1x16xf32>
    %12 = vector.broadcast %11 : vector<1x16xf32> to vector<128x16xf32>
    %13 = arith.addf %10, %12 : vector<128x16xf32>
    %14 = vector.extract_strided_slice %13 {offsets = [0, 0], sizes = [128, 8], strides = [1, 1]} : vector<128x16xf32> to vector<128x8xf32>
    %15 = vector.extract_strided_slice %13 {offsets = [0, 8], sizes = [128, 8], strides = [1, 1]} : vector<128x16xf32> to vector<128x8xf32>
    %c0_11 = arith.constant 0 : index
    %c0_12 = arith.constant 0 : index
    %16 = vector.load %arg6[%c0_11, %c0_12] : memref<128x8xf32, #tpu.memory_space<vmem>>, vector<128x8xf32>
    %cst_13 = arith.constant 5.000000e-01 : f32
    %17 = vector.broadcast %cst_13 : f32 to vector<128x8xf32>
    %18 = arith.mulf %17, %15 : vector<128x8xf32>
    %19 = math.exp %18 : vector<128x8xf32>
    %20 = arith.mulf %16, %19 : vector<128x8xf32>
    %21 = arith.addf %14, %20 : vector<128x8xf32>
    %c0_14 = arith.constant 0 : index
    %c0_15 = arith.constant 0 : index
    %22 = vector.load %arg7[%c0_14, %c0_15] : memref<128x24xf32, #tpu.memory_space<vmem>>, vector<128x16xf32>
    tpu.vector_store %arg7[%c0_14, %c0_15], %13 {strides = array<i32>} : memref<128x24xf32, #tpu.memory_space<vmem>>, vector<128x16xf32>,
    %c0_16 = arith.constant 0 : index
    %c16 = arith.constant 16 : index
    %23 = vector.load %arg7[%c0_16, %c16] : memref<128x24xf32, #tpu.memory_space<vmem>>, vector<128x8xf32>
    tpu.vector_store %arg7[%c0_16, %c16], %21 {strides = array<i32>} : memref<128x24xf32, #tpu.memory_space<vmem>>, vector<128x8xf32>,
    return
  }
  func.func @transform_0(%arg0: i32) -> (i32, i32) {
    %c0_i32 = arith.constant 0 : i32
    %c0_i32_0 = arith.constant 0 : i32
    return %arg0, %c0_i32 : i32, i32
  }
  func.func @transform_1(%arg0: i32) -> (i32, i32) {
    %c0_i32 = arith.constant 0 : i32
    %c0_i32_0 = arith.constant 0 : i32
    %c0_i32_1 = arith.constant 0 : i32
    return %c0_i32, %c0_i32_0 : i32, i32
  }
  func.func @transform_2(%arg0: i32) -> (i32, i32) {
    %c0_i32 = arith.constant 0 : i32
    %c0_i32_0 = arith.constant 0 : i32
    %c0_i32_1 = arith.constant 0 : i32
    return %c0_i32, %c0_i32_0 : i32, i32
  }
  func.func @transform_3(%arg0: i32) -> (i32, i32) {
    %c0_i32 = arith.constant 0 : i32
    %c0_i32_0 = arith.constant 0 : i32
    %c0_i32_1 = arith.constant 0 : i32
    return %c0_i32, %c0_i32_0 : i32, i32
  }
  func.func @transform_4(%arg0: i32) -> (i32, i32) {
    %c0_i32 = arith.constant 0 : i32
    %c0_i32_0 = arith.constant 0 : i32
    %c0_i32_1 = arith.constant 0 : i32
    return %c0_i32, %c0_i32_0 : i32, i32
  }
  func.func @transform_5(%arg0: i32) -> (i32, i32) {
    %c0_i32 = arith.constant 0 : i32
    %c0_i32_0 = arith.constant 0 : i32
    return %arg0, %c0_i32 : i32, i32
  }
  func.func @transform_6(%arg0: i32) -> (i32, i32) {
    %c0_i32 = arith.constant 0 : i32
    %c0_i32_0 = arith.constant 0 : i32
    return %arg0, %c0_i32 : i32, i32
  }
}

</mosaic_0001>

<llo_original>
// kernel: tpu_custom_call.1
$region0: #{tpu_custom_call.1}
  #allocation0 [shape = 'u32[]', space=smem, size = 0x4, offset = 0x4, fixed_abs, tag = 'smem constant byte address 0x4 - core index']
  #allocation1 [shape = 'u32[144,128]{1,0:T(1,128)}', space=vmem, size = 0x12000, scoped, tag = 'internal scratch']
  %s0 = inlined_call_operand.vmem [shape: f32[256,32], index: 0, kind: input, shape index: {}]
  %s1 = inlined_call_operand.vmem [shape: f32[32,32], index: 1, kind: input, shape index: {}]
  %s2 = inlined_call_operand.vmem [shape: f32[1,32], index: 2, kind: input, shape index: {}]
  %s3 = inlined_call_operand.vmem [shape: f32[32,16], index: 3, kind: input, shape index: {}]
  %s4 = inlined_call_operand.vmem [shape: f32[1,16], index: 4, kind: input, shape index: {}]
  %s5 = inlined_call_operand.vmem [shape: f32[256,8], index: 5, kind: input, shape index: {}]
  %s6 = inlined_call_operand.vmem [shape: f32[256,24], index: 6, kind: output, shape index: {}]
  %s7 = sld [smem:[#allocation0]]
  $region57: #{tpu_custom_call.1} parent=0
    _
  %s9 = ssub.s32 1, %s7
  %s10 = scalar_select 0, %s9, %s7
  loop: start=0, step=1, limit=4
  $region2: #{tpu_custom_call.1} parent=0 // loop_pre_header
    _
  $region3: #{tpu_custom_call.1} parent=0 // loop_header
    %s12 = sphi 0, %s16
    %p13 = scmp.ge.s32.totalorder %s12, 4
    %s22 = sphi 0, %s24
    %s25 = sphi 0, %s22
    %s26 = sphi 0, %s25
    %s42 = sphi 0, %s26
    %s46 = sphi 0, %s46
    %s48 = sphi 0, %s46
    %s49 = sphi 0, %s48
    %s63 = sphi 0, %s49
    %s67 = sphi 0, %s67
    %s69 = sphi 0, %s67
    %s70 = sphi 0, %s69
    %s84 = sphi 0, %s70
    %s88 = sphi 0, %s88
    %s90 = sphi 0, %s88
    %s91 = sphi 0, %s90
    %s105 = sphi 0, %s91
    %s109 = sphi 0, %s109
    %s111 = sphi 0, %s109
    %s112 = sphi 0, %s111
    %s126 = sphi 0, %s112
    %s132 = sphi 0, %s134
    %s135 = sphi 0, %s132
    %s136 = sphi 0, %s135
    %s152 = sphi 0, %s136
    %s158 = sphi 0, %s160
    %s161 = sphi 0, %s158
    %s162 = sphi 0, %s161
    %s178 = sphi 0, %s162
  $region4: #{tpu_custom_call.1} parent=0 // loop_header_branch
    %15 = sbr.rel (%p13) target = $region8
  $region5: #{tpu_custom_call.1} parent=0 // loop_body
    %s17 = ssub.s32 %s12, 1
    %s18 = ssub.s32 %s12, 2
    %s19 = sadd.s32 %s12, 1
    %s20 = ssub.s32 %s12, %s19
    %p21 = scmp.eq.s32.totalorder %s20, 0
    %s23 = sadd.s32 %s22, 1
    %s24 = scalar_select %p21, %s22, %s23
    %p27 = pneg %p21
    %p28 = scmp.eq.s32.totalorder %s12, 1
    %p29 = por %p27, %p28
    %p30 = scmp.ne.s32.totalorder %s22, %s25
    %p31 = scmp.eq.s32.totalorder %s12, 0
    %p32 = por %p30, %p31
    %p33 = scmp.ne.s32.totalorder %s22, %s25
    %p34 = scmp.eq.s32.totalorder %s17, 1
    %p35 = por %p33, %p34
    %p36 = scmp.ne.s32.totalorder %s25, %s26
    %p37 = scmp.eq.s32.totalorder %s17, 0
    %p38 = por %p36, %p37
    %p39 = scmp.ne.s32.totalorder %s25, %s26
    %p40 = scmp.eq.s32.totalorder %s18, 1
    %p41 = por %p39, %p40
    %p43 = scmp.ne.s32.totalorder %s26, %s42
    %p44 = scmp.eq.s32.totalorder %s18, 0
    %p45 = por %p43, %p44
    %s47 = sadd.s32 %s46, 1
    %p50 = scmp.eq.s32.totalorder %s12, 1
    %p51 = scmp.ne.s32.totalorder %s46, %s48
    %p52 = scmp.eq.s32.totalorder %s12, 0
    %p53 = por %p51, %p52
    %p54 = scmp.ne.s32.totalorder %s46, %s48
    %p55 = scmp.eq.s32.totalorder %s17, 1
    %p56 = por %p54, %p55
    %p57 = scmp.ne.s32.totalorder %s48, %s49
    %p58 = scmp.eq.s32.totalorder %s17, 0
    %p59 = por %p57, %p58
    %p60 = scmp.ne.s32.totalorder %s48, %s49
    %p61 = scmp.eq.s32.totalorder %s18, 1
    %p62 = por %p60, %p61
    %p64 = scmp.ne.s32.totalorder %s49, %s63
    %p65 = scmp.eq.s32.totalorder %s18, 0
    %p66 = por %p64, %p65
    %s68 = sadd.s32 %s67, 1
    %p71 = scmp.eq.s32.totalorder %s12, 1
    %p72 = scmp.ne.s32.totalorder %s67, %s69
    %p73 = scmp.eq.s32.totalorder %s12, 0
    %p74 = por %p72, %p73
    %p75 = scmp.ne.s32.totalorder %s67, %s69
    %p76 = scmp.eq.s32.totalorder %s17, 1
    %p77 = por %p75, %p76
    %p78 = scmp.ne.s32.totalorder %s69, %s70
    %p79 = scmp.eq.s32.totalorder %s17, 0
    %p80 = por %p78, %p79
    %p81 = scmp.ne.s32.totalorder %s69, %s70
    %p82 = scmp.eq.s32.totalorder %s18, 1
    %p83 = por %p81, %p82
    %p85 = scmp.ne.s32.totalorder %s70, %s84
    %p86 = scmp.eq.s32.totalorder %s18, 0
    %p87 = por %p85, %p86
    %s89 = sadd.s32 %s88, 1
    %p92 = scmp.eq.s32.totalorder %s12, 1
    %p93 = scmp.ne.s32.totalorder %s88, %s90
    %p94 = scmp.eq.s32.totalorder %s12, 0
    %p95 = por %p93, %p94
    %p96 = scmp.ne.s32.totalorder %s88, %s90
    %p97 = scmp.eq.s32.totalorder %s17, 1
    %p98 = por %p96, %p97
    %p99 = scmp.ne.s32.totalorder %s90, %s91
    %p100 = scmp.eq.s32.totalorder %s17, 0
    %p101 = por %p99, %p100
    %p102 = scmp.ne.s32.totalorder %s90, %s91
    %p103 = scmp.eq.s32.totalorder %s18, 1
    %p104 = por %p102, %p103
    %p106 = scmp.ne.s32.totalorder %s91, %s105
    %p107 = scmp.eq.s32.totalorder %s18, 0
    %p108 = por %p106, %p107
    %s110 = sadd.s32 %s109, 1
    %p113 = scmp.eq.s32.totalorder %s12, 1
    %p114 = scmp.ne.s32.totalorder %s109, %s111
    %p115 = scmp.eq.s32.totalorder %s12, 0
    %p116 = por %p114, %p115
    %p117 = scmp.ne.s32.totalorder %s109, %s111
    %p118 = scmp.eq.s32.totalorder %s17, 1
    %p119 = por %p117, %p118
    %p120 = scmp.ne.s32.totalorder %s111, %s112
    %p121 = scmp.eq.s32.totalorder %s17, 0
    %p122 = por %p120, %p121
    %p123 = scmp.ne.s32.totalorder %s111, %s112
    %p124 = scmp.eq.s32.totalorder %s18, 1
    %p125 = por %p123, %p124
    %p127 = scmp.ne.s32.totalorder %s112, %s126
    %p128 = scmp.eq.s32.totalorder %s18, 0
    %p129 = por %p127, %p128
    %s130 = ssub.s32 %s12, %s19
    %p131 = scmp.eq.s32.totalorder %s130, 0
    %s133 = sadd.s32 %s132, 1
    %s134 = scalar_select %p131, %s132, %s133
    %p137 = pneg %p131
    %p138 = scmp.eq.s32.totalorder %s12, 1
    %p139 = por %p137, %p138
    %p140 = scmp.ne.s32.totalorder %s132, %s135
    %p141 = scmp.eq.s32.totalorder %s12, 0
    %p142 = por %p140, %p141
    %p143 = scmp.ne.s32.totalorder %s132, %s135
    %p144 = scmp.eq.s32.totalorder %s17, 1
    %p145 = por %p143, %p144
    %p146 = scmp.ne.s32.totalorder %s135, %s136
    %p147 = scmp.eq.s32.totalorder %s17, 0
    %p148 = por %p146, %p147
    %p149 = scmp.ne.s32.totalorder %s135, %s136
    %p150 = scmp.eq.s32.totalorder %s18, 1
    %p151 = por %p149, %p150
    %p153 = scmp.ne.s32.totalorder %s136, %s152
    %p154 = scmp.eq.s32.totalorder %s18, 0
    %p155 = por %p153, %p154
    %s156 = ssub.s32 %s12, %s19
    %p157 = scmp.eq.s32.totalorder %s156, 0
    %s159 = sadd.s32 %s158, 1
    %s160 = scalar_select %p157, %s158, %s159
    %p163 = pneg %p157
    %p164 = scmp.eq.s32.totalorder %s12, 1
    %p165 = por %p163, %p164
    %p166 = scmp.ne.s32.totalorder %s158, %s161
    %p167 = scmp.eq.s32.totalorder %s12, 0
    %p168 = por %p166, %p167
    %p169 = scmp.ne.s32.totalorder %s158, %s161
    %p170 = scmp.eq.s32.totalorder %s17, 1
    %p171 = por %p169, %p170
    %p172 = scmp.ne.s32.totalorder %s161, %s162
    %p173 = scmp.eq.s32.totalorder %s17, 0
    %p174 = por %p172, %p173
    %p175 = scmp.ne.s32.totalorder %s161, %s162
    %p176 = scmp.eq.s32.totalorder %s18, 1
    %p177 = por %p175, %p176
    %p179 = scmp.ne.s32.totalorder %s162, %s178
    %p180 = scmp.eq.s32.totalorder %s18, 0
    %p181 = por %p179, %p180
    %p182 = scmp.le.s32.totalorder 1, %s12
    %p183 = scmp.lt.s32.totalorder %s12, 3
    %p184 = pnand %p182, %p183
    %p185 = pneg %p184
    // Predicated region
    $region9: #{tpu_custom_call.1} parent=5 // pred_check
      _
    $region10: #{tpu_custom_call.1} parent=5 // pred_check_branch
      %187 = sbr.rel (%p184) target = $region12
    $region11: #{tpu_custom_call.1} parent=5 // pred_region
      %s188 = ssub.s32 %s12, 1
      // Predicated region
      $region13: #{tpu_custom_call.1} parent=11 // pred_check
        %p189 = pneg %p59
      $region14: #{tpu_custom_call.1} parent=11 // pred_check_branch
        %191 = sbr.rel (%p189) target = $region16
      $region15: #{tpu_custom_call.1} parent=11 // pred_region
        _
      $region16: #{tpu_custom_call.1} parent=11 // pred_fallthru
        _
      // Predicated region
      $region17: #{tpu_custom_call.1} parent=11 // pred_check
        %p192 = pneg %p80
      $region18: #{tpu_custom_call.1} parent=11 // pred_check_branch
        %194 = sbr.rel (%p192) target = $region20
      $region19: #{tpu_custom_call.1} parent=11 // pred_region
        _
      $region20: #{tpu_custom_call.1} parent=11 // pred_fallthru
        _
      // Predicated region
      $region21: #{tpu_custom_call.1} parent=11 // pred_check
        %p195 = pneg %p101
      $region22: #{tpu_custom_call.1} parent=11 // pred_check_branch
        %197 = sbr.rel (%p195) target = $region24
      $region23: #{tpu_custom_call.1} parent=11 // pred_region
        _
      $region24: #{tpu_custom_call.1} parent=11 // pred_fallthru
        _
      // Predicated region
      $region25: #{tpu_custom_call.1} parent=11 // pred_check
        %p198 = pneg %p122
      $region26: #{tpu_custom_call.1} parent=11 // pred_check_branch
        %200 = sbr.rel (%p198) target = $region28
      $region27: #{tpu_custom_call.1} parent=11 // pred_region
        _
      $region28: #{tpu_custom_call.1} parent=11 // pred_fallthru
        _
    $region12: #{tpu_custom_call.1} parent=5 // pred_fallthru
      _
    %p201 = scmp.lt.s32.totalorder %s12, 2
    // Predicated region
    $region29: #{tpu_custom_call.1} parent=5 // pred_check
      %p202 = pneg %p201
    $region30: #{tpu_custom_call.1} parent=5 // pred_check_branch
      %204 = sbr.rel (%p202) target = $region32
    $region31: #{tpu_custom_call.1} parent=5 // pred_region
      // Predicated region
      $region33: #{tpu_custom_call.1} parent=31 // pred_check
        %p205 = pneg %p32
      $region34: #{tpu_custom_call.1} parent=31 // pred_check_branch
        %207 = sbr.rel (%p205) target = $region36
      $region35: #{tpu_custom_call.1} parent=31 // pred_region
        %s208 = smul.u32 16, %s12
        %p209 = scmp.lt.s32.totalorder %s208, 31
        %s210 = scalar_select %p209, %s208, 31
        %s211 = smul.addr %s210, 8
        %s212 = scalar_lea.vmem %s0, %s211
        %s213 = smul.u32 16, %s12
      $region36: #{tpu_custom_call.1} parent=31 // pred_fallthru
        _
      // Predicated region
      $region37: #{tpu_custom_call.1} parent=31 // pred_check
        %p214 = pneg %p142
      $region38: #{tpu_custom_call.1} parent=31 // pred_check_branch
        %216 = sbr.rel (%p214) target = $region40
      $region39: #{tpu_custom_call.1} parent=31 // pred_region
        %s217 = smul.u32 16, %s12
        %p218 = scmp.lt.s32.totalorder %s217, 31
        %s219 = scalar_select %p218, %s217, 31
        %s220 = smul.addr %s219, 8
        %s221 = scalar_lea.vmem %s5, %s220
        %s222 = smul.u32 16, %s12
      $region40: #{tpu_custom_call.1} parent=31 // pred_fallthru
        _
    $region32: #{tpu_custom_call.1} parent=5 // pred_fallthru
      _
    %p223 = scmp.le.s32.totalorder 1, %s12
    %p224 = scmp.lt.s32.totalorder %s12, 3
    %p225 = pnand %p223, %p224
    %p226 = pneg %p225
    // Predicated region
    $region41: #{tpu_custom_call.1} parent=5 // pred_check
      _
    $region42: #{tpu_custom_call.1} parent=5 // pred_check_branch
      %228 = sbr.rel (%p225) target = $region44
    $region43: #{tpu_custom_call.1} parent=5 // pred_region
      %s229 = ssub.s32 %s12, 1
      %s230 = smul.u32 16, %s17
      %p231 = scmp.lt.s32.totalorder %s230, 31
      %s232 = scalar_select %p231, %s230, 31
      %s233 = smul.addr %s232, 8
      %s234 = scalar_lea.vmem %s0, %s233
      %p235 = pneg %p38
      %p236 = pneg %p35
      %p237 = pneg %p59
      %p238 = pneg %p56
      %p239 = pneg %p80
      %p240 = pneg %p77
      %p241 = pneg %p101
      %p242 = pneg %p98
      %p243 = pneg %p122
      %p244 = pneg %p119
      %s245 = smul.u32 16, %s17
      %p246 = scmp.lt.s32.totalorder %s245, 31
      %s247 = scalar_select %p246, %s245, 31
      %s248 = smul.addr %s247, 8
      %s249 = scalar_lea.vmem %s5, %s248
      %p250 = pneg %p148
      %p251 = pneg %p145
      %p252 = pneg %p174
      %p253 = pneg %p171
      %s254 = smul.u32 16, %s17
      %p255 = scmp.lt.s32.totalorder %s254, 31
      %s256 = scalar_select %p255, %s254, 31
      %s257 = smul.addr %s256, 8
      %s258 = scalar_lea.vmem %s6, %s257
      %s259 = smul.u32 16, %s17
      %p260 = scmp.lt.s32.totalorder %s259, 31
      %s261 = scalar_select %p260, %s259, 31
      %s262 = smul.addr %s261, 8
      %s263 = scalar_lea.vmem %s0, %s262
      %s264 = smul.u32 16, %s17
      %s265 = smul.u32 16, %s17
      %p266 = scmp.lt.s32.totalorder %s265, 31
      %s267 = scalar_select %p266, %s265, 31
      %s268 = smul.addr %s267, 8
      %s269 = scalar_lea.vmem %s5, %s268
      %s270 = smul.u32 16, %s17
      %s271 = smul.u32 16, %s17
      %p272 = scmp.lt.s32.totalorder %s271, 31
      %s273 = scalar_select %p272, %s271, 31
      %s274 = smul.addr %s273, 8
      %s275 = scalar_lea.vmem %s6, %s274
      %s276 = smul.u32 16, %s17
      %v277 = vld [vmem:[%s263] sm:$0xff]
      %v278 = vld [vmem:[%s263 + $0x8] sm:$0xff]
      %v279 = vld [vmem:[%s263 + $0x10] sm:$0xff]
      %v280 = vld [vmem:[%s263 + $0x18] sm:$0xff]
      %v281 = vld [vmem:[%s263 + $0x20] sm:$0xff]
      %v282 = vld [vmem:[%s263 + $0x28] sm:$0xff]
      %v283 = vld [vmem:[%s263 + $0x30] sm:$0xff]
      %v284 = vld [vmem:[%s263 + $0x38] sm:$0xff]
      %v285 = vld [vmem:[%s263 + $0x40] sm:$0xff]
      %v286 = vld [vmem:[%s263 + $0x48] sm:$0xff]
      %v287 = vld [vmem:[%s263 + $0x50] sm:$0xff]
      %v288 = vld [vmem:[%s263 + $0x58] sm:$0xff]
      %v289 = vld [vmem:[%s263 + $0x60] sm:$0xff]
      %v290 = vld [vmem:[%s263 + $0x68] sm:$0xff]
      %v291 = vld [vmem:[%s263 + $0x70] sm:$0xff]
      %v292 = vld [vmem:[%s263 + $0x78] sm:$0xff]
      %v293 = vld [vmem:[%s1] sm:$0xff]
      %v294 = vld [vmem:[%s1 + $0x8] sm:$0xff]
      %v295 = vld [vmem:[%s1 + $0x10] sm:$0xff]
      %v296 = vld [vmem:[%s1 + $0x18] sm:$0xff]
      %v297 = vld [vmem:[%s2] sm:$0x1]
      %v299 = vlaneseq
      %v300 = vshrl.u32 %v299, 7
      %v301 = vsub.s32 0, %v300
      %v302 = vrot.slane %v297, %v301
      %vm304 = vcmask 261120
      %v306 = vsel %vm304, %v277, 0
      %v309 = vsel %vm304, %v278, 0
      %v312 = vsel %vm304, %v279, 0
      %v315 = vsel %vm304, %v280, 0
      %v318 = vsel %vm304, %v281, 0
      %v321 = vsel %vm304, %v282, 0
      %v324 = vsel %vm304, %v283, 0
      %v327 = vsel %vm304, %v284, 0
      %v330 = vsel %vm304, %v285, 0
      %v333 = vsel %vm304, %v286, 0
      %v336 = vsel %vm304, %v287, 0
      %v339 = vsel %vm304, %v288, 0
      %v342 = vsel %vm304, %v289, 0
      %v345 = vsel %vm304, %v290, 0
      %v348 = vsel %vm304, %v291, 0
      %v351 = vsel %vm304, %v292, 0
      %353 = vmatprep.subr.mxu0 0.0
      %354 = vmatpush1.msra.mxu0 %v293
      %355 = vmatprep.subr.mxu0 0.0
      %356 = vmatpush1.msra.mxu0 %v294
      %357 = vmatprep.subr.mxu0 0.0
      %358 = vmatpush1.msra.mxu0 %v295
      %359 = vmatprep.subr.mxu0 0.0
      %360 = vmatpush1.msra.mxu0 %v296
      %361 = vmatprep.subr.mxu0 0.0
      %362 = vmatpush1.msra.mxu0 0.0
      %363 = vmatprep.subr.mxu0 0.0
      %364 = vmatpush1.msra.mxu0 0.0
      %365 = vmatprep.subr.mxu0 0.0
      %366 = vmatpush1.msra.mxu0 0.0
      %367 = vmatprep.subr.mxu0 0.0
      %368 = vmatpush1.msra.mxu0 0.0
      %369 = vmatprep.subr.mxu0 0.0
      %370 = vmatpush1.msra.mxu0 0.0
      %371 = vmatprep.subr.mxu0 0.0
      %372 = vmatpush1.msra.mxu0 0.0
      %373 = vmatprep.subr.mxu0 0.0
      %374 = vmatpush1.msra.mxu0 0.0
      %375 = vmatprep.subr.mxu0 0.0
      %376 = vmatpush1.msra.mxu0 0.0
      %377 = vmatprep.subr.mxu0 0.0
      %378 = vmatpush1.msra.mxu0 0.0
      %379 = vmatprep.subr.mxu0 0.0
      %380 = vmatpush1.msra.mxu0 0.0
      %381 = vmatprep.subr.mxu0 0.0
      %382 = vmatpush1.msra.mxu0 0.0
      %383 = vmatprep.subr.mxu0 0.0
      %384 = vmatpush1.msra.mxu0 0.0
      %385 = vmatprep.subr.mxu0 0.0
      %386 = vmatpush1.msra.mxu0 0.0
      %387 = vmatprep.subr.mxu0 0.0
      %388 = vmatpush1.msra.mxu0 0.0
      %389 = vmatprep.subr.mxu0 0.0
      %390 = vmatpush1.msra.mxu0 0.0
      %391 = vmatprep.subr.mxu0 0.0
      %392 = vmatpush1.msra.mxu0 0.0
      %393 = vmatprep.subr.mxu0 0.0
      %394 = vmatpush1.msra.mxu0 0.0
      %395 = vmatprep.subr.mxu0 0.0
      %396 = vmatpush1.msra.mxu0 0.0
      %397 = vmatprep.subr.mxu0 0.0
      %398 = vmatpush1.msra.mxu0 0.0
      %399 = vmatprep.subr.mxu0 0.0
      %400 = vmatpush1.msra.mxu0 0.0
      %401 = vmatprep.subr.mxu0 0.0
      %402 = vmatpush1.msra.mxu0 0.0
      %403 = vmatprep.subr.mxu0 0.0
      %404 = vmatpush1.msra.mxu0 0.0
      %405 = vmatprep.subr.mxu0 0.0
      %406 = vmatpush1.msra.mxu0 0.0
      %407 = vmatprep.subr.mxu0 0.0
      %408 = vmatpush1.msra.mxu0 0.0
      %409 = vmatprep.subr.mxu0 0.0
      %410 = vmatpush1.msra.mxu0 0.0
      %411 = vmatprep.subr.mxu0 0.0
      %412 = vmatpush1.msra.mxu0 0.0
      %413 = vmatprep.subr.mxu0 0.0
      %414 = vmatpush1.msra.mxu0 0.0
      %415 = vmatprep.subr.mxu0 0.0
      %416 = vmatpush1.msra.mxu0 0.0
      %417 = vmatprep.mubr.f32.mxu0 0.0
      %418 = vmatmul.mubr.f32.gmra.mrb[0].mxu0 %v306
      %v419 = vpop.f32.mrb[0].mxu0
      %v420 = vadd.f32 %v302, %v419
      %v421 = vpop.f32.mrb[0].mxu0
      %422 = vmatprep.mubr.f32.mxu0 0.0
      %423 = vmatmul.mubr.f32.gmra.mrb[0].mxu0 %v309
      %v424 = vpop.f32.mrb[0].mxu0
      %v425 = vadd.f32 %v302, %v424
      %v426 = vpop.f32.mrb[0].mxu0
      %427 = vmatprep.mubr.f32.mxu0 0.0
      %428 = vmatmul.mubr.f32.gmra.mrb[0].mxu0 %v312
      %v429 = vpop.f32.mrb[0].mxu0
      %v430 = vadd.f32 %v302, %v429
      %v431 = vpop.f32.mrb[0].mxu0
      %432 = vmatprep.mubr.f32.mxu0 0.0
      %433 = vmatmul.mubr.f32.gmra.mrb[0].mxu0 %v315
      %v434 = vpop.f32.mrb[0].mxu0
      %v435 = vadd.f32 %v302, %v434
      %v436 = vpop.f32.mrb[0].mxu0
      %437 = vmatprep.mubr.f32.mxu0 0.0
      %438 = vmatmul.mubr.f32.gmra.mrb[0].mxu0 %v318
      %v439 = vpop.f32.mrb[0].mxu0
      %v440 = vadd.f32 %v302, %v439
      %v441 = vpop.f32.mrb[0].mxu0
      %442 = vmatprep.mubr.f32.mxu0 0.0
      %443 = vmatmul.mubr.f32.gmra.mrb[0].mxu0 %v321
      %v444 = vpop.f32.mrb[0].mxu0
      %v445 = vadd.f32 %v302, %v444
      %v446 = vpop.f32.mrb[0].mxu0
      %447 = vmatprep.mubr.f32.mxu0 0.0
      %448 = vmatmul.mubr.f32.gmra.mrb[0].mxu0 %v324
      %v449 = vpop.f32.mrb[0].mxu0
      %v450 = vadd.f32 %v302, %v449
      %v451 = vpop.f32.mrb[0].mxu0
      %452 = vmatprep.mubr.f32.mxu0 0.0
      %453 = vmatmul.mubr.f32.gmra.mrb[0].mxu0 %v327
      %v454 = vpop.f32.mrb[0].mxu0
      %v455 = vadd.f32 %v302, %v454
      %v456 = vpop.f32.mrb[0].mxu0
      %457 = vmatprep.mubr.f32.mxu0 0.0
      %458 = vmatmul.mubr.f32.gmra.mrb[0].mxu0 %v330
      %v459 = vpop.f32.mrb[0].mxu0
      %v460 = vadd.f32 %v302, %v459
      %v461 = vpop.f32.mrb[0].mxu0
      %462 = vmatprep.mubr.f32.mxu0 0.0
      %463 = vmatmul.mubr.f32.gmra.mrb[0].mxu0 %v333
      %v464 = vpop.f32.mrb[0].mxu0
      %v465 = vadd.f32 %v302, %v464
      %v466 = vpop.f32.mrb[0].mxu0
      %467 = vmatprep.mubr.f32.mxu0 0.0
      %468 = vmatmul.mubr.f32.gmra.mrb[0].mxu0 %v336
      %v469 = vpop.f32.mrb[0].mxu0
      %v470 = vadd.f32 %v302, %v469
      %v471 = vpop.f32.mrb[0].mxu0
      %472 = vmatprep.mubr.f32.mxu0 0.0
      %473 = vmatmul.mubr.f32.gmra.mrb[0].mxu0 %v339
      %v474 = vpop.f32.mrb[0].mxu0
      %v475 = vadd.f32 %v302, %v474
      %v476 = vpop.f32.mrb[0].mxu0
      %477 = vmatprep.mubr.f32.mxu0 0.0
      %478 = vmatmul.mubr.f32.gmra.mrb[0].mxu0 %v342
      %v479 = vpop.f32.mrb[0].mxu0
      %v480 = vadd.f32 %v302, %v479
      %v481 = vpop.f32.mrb[0].mxu0
      %482 = vmatprep.mubr.f32.mxu0 0.0
      %483 = vmatmul.mubr.f32.gmra.mrb[0].mxu0 %v345
      %v484 = vpop.f32.mrb[0].mxu0
      %v485 = vadd.f32 %v302, %v484
      %v486 = vpop.f32.mrb[0].mxu0
      %487 = vmatprep.mubr.f32.mxu0 0.0
      %488 = vmatmul.mubr.f32.gmra.mrb[0].mxu0 %v348
      %v489 = vpop.f32.mrb[0].mxu0
      %v490 = vadd.f32 %v302, %v489
      %v491 = vpop.f32.mrb[0].mxu0
      %492 = vmatprep.mubr.f32.mxu0 0.0
      %493 = vmatmul.mubr.f32.gmra.mrb[0].mxu0 %v351
      %v494 = vpop.f32.mrb[0].mxu0
      %v495 = vadd.f32 %v302, %v494
      %v496 = vpop.f32.mrb[0].mxu0
      %497 = vdwg.mxu0
      %v498 = vmul.f32 %v420, 0.1
      %v499 = vmul.f32 %v425, 0.1
      %v500 = vmul.f32 %v430, 0.1
      %v501 = vmul.f32 %v435, 0.1
      %v502 = vmul.f32 %v440, 0.1
      %v503 = vmul.f32 %v445, 0.1
      %v504 = vmul.f32 %v450, 0.1
      %v505 = vmul.f32 %v455, 0.1
      %v506 = vmul.f32 %v460, 0.1
      %v507 = vmul.f32 %v465, 0.1
      %v508 = vmul.f32 %v470, 0.1
      %v509 = vmul.f32 %v475, 0.1
      %v510 = vmul.f32 %v480, 0.1
      %v511 = vmul.f32 %v485, 0.1
      %v512 = vmul.f32 %v490, 0.1
      %v513 = vmul.f32 %v495, 0.1
      %v514 = vmax.f32 %v420, %v498
      %v515 = vmax.f32 %v425, %v499
      %v516 = vmax.f32 %v430, %v500
      %v517 = vmax.f32 %v435, %v501
      %v518 = vmax.f32 %v440, %v502
      %v519 = vmax.f32 %v445, %v503
      %v520 = vmax.f32 %v450, %v504
      %v521 = vmax.f32 %v455, %v505
      %v522 = vmax.f32 %v460, %v506
      %v523 = vmax.f32 %v465, %v507
      %v524 = vmax.f32 %v470, %v508
      %v525 = vmax.f32 %v475, %v509
      %v526 = vmax.f32 %v480, %v510
      %v527 = vmax.f32 %v485, %v511
      %v528 = vmax.f32 %v490, %v512
      %v529 = vmax.f32 %v495, %v513
      %v530 = vld [vmem:[%s3] sm:$0xff]
      %v531 = vld [vmem:[%s3 + $0x8] sm:$0xff]
      %v532 = vld [vmem:[%s3 + $0x10] sm:$0xff]
      %v533 = vld [vmem:[%s3 + $0x18] sm:$0xff]
      %v534 = vld [vmem:[%s4] sm:$0x1]
      %v536 = vlaneseq
      %v537 = vshrl.u32 %v536, 7
      %v538 = vsub.s32 0, %v537
      %v539 = vrot.slane %v534, %v538
      %v542 = vsel %vm304, %v514, 0
      %v545 = vsel %vm304, %v515, 0
      %v548 = vsel %vm304, %v516, 0
      %v551 = vsel %vm304, %v517, 0
      %v554 = vsel %vm304, %v518, 0
      %v557 = vsel %vm304, %v519, 0
      %v560 = vsel %vm304, %v520, 0
      %v563 = vsel %vm304, %v521, 0
      %v566 = vsel %vm304, %v522, 0
      %v569 = vsel %vm304, %v523, 0
      %v572 = vsel %vm304, %v524, 0
      %v575 = vsel %vm304, %v525, 0
      %v578 = vsel %vm304, %v526, 0
      %v581 = vsel %vm304, %v527, 0
      %v584 = vsel %vm304, %v528, 0
      %v587 = vsel %vm304, %v529, 0
      %589 = vmatprep.subr.mxu0 0.0
      %590 = vmatpush1.msra.mxu0 %v530
      %591 = vmatprep.subr.mxu0 0.0
      %592 = vmatpush1.msra.mxu0 %v531
      %593 = vmatprep.subr.mxu0 0.0
      %594 = vmatpush1.msra.mxu0 %v532
      %595 = vmatprep.subr.mxu0 0.0
      %596 = vmatpush1.msra.mxu0 %v533
      %597 = vmatprep.subr.mxu0 0.0
      %598 = vmatpush1.msra.mxu0 0.0
      %599 = vmatprep.subr.mxu0 0.0
      %600 = vmatpush1.msra.mxu0 0.0
      %601 = vmatprep.subr.mxu0 0.0
      %602 = vmatpush1.msra.mxu0 0.0
      %603 = vmatprep.subr.mxu0 0.0
      %604 = vmatpush1.msra.mxu0 0.0
      %605 = vmatprep.subr.mxu0 0.0
      %606 = vmatpush1.msra.mxu0 0.0
      %607 = vmatprep.subr.mxu0 0.0
      %608 = vmatpush1.msra.mxu0 0.0
      %609 = vmatprep.subr.mxu0 0.0
      %610 = vmatpush1.msra.mxu0 0.0
      %611 = vmatprep.subr.mxu0 0.0
      %612 = vmatpush1.msra.mxu0 0.0
      %613 = vmatprep.subr.mxu0 0.0
      %614 = vmatpush1.msra.mxu0 0.0
      %615 = vmatprep.subr.mxu0 0.0
      %616 = vmatpush1.msra.mxu0 0.0
      %617 = vmatprep.subr.mxu0 0.0
      %618 = vmatpush1.msra.mxu0 0.0
      %619 = vmatprep.subr.mxu0 0.0
      %620 = vmatpush1.msra.mxu0 0.0
      %621 = vmatprep.subr.mxu0 0.0
      %622 = vmatpush1.msra.mxu0 0.0
      %623 = vmatprep.subr.mxu0 0.0
      %624 = vmatpush1.msra.mxu0 0.0
      %625 = vmatprep.subr.mxu0 0.0
      %626 = vmatpush1.msra.mxu0 0.0
      %627 = vmatprep.subr.mxu0 0.0
      %628 = vmatpush1.msra.mxu0 0.0
      %629 = vmatprep.subr.mxu0 0.0
      %630 = vmatpush1.msra.mxu0 0.0
      %631 = vmatprep.subr.mxu0 0.0
      %632 = vmatpush1.msra.mxu0 0.0
      %633 = vmatprep.subr.mxu0 0.0
      %634 = vmatpush1.msra.mxu0 0.0
      %635 = vmatprep.subr.mxu0 0.0
      %636 = vmatpush1.msra.mxu0 0.0
      %637 = vmatprep.subr.mxu0 0.0
      %638 = vmatpush1.msra.mxu0 0.0
      %639 = vmatprep.subr.mxu0 0.0
      %640 = vmatpush1.msra.mxu0 0.0
      %641 = vmatprep.subr.mxu0 0.0
      %642 = vmatpush1.msra.mxu0 0.0
      %643 = vmatprep.subr.mxu0 0.0
      %644 = vmatpush1.msra.mxu0 0.0
      %645 = vmatprep.subr.mxu0 0.0
      %646 = vmatpush1.msra.mxu0 0.0
      %647 = vmatprep.subr.mxu0 0.0
      %648 = vmatpush1.msra.mxu0 0.0
      %649 = vmatprep.subr.mxu0 0.0
      %650 = vmatpush1.msra.mxu0 0.0
      %651 = vmatprep.subr.mxu0 0.0
      %652 = vmatpush1.msra.mxu0 0.0
      %653 = vmatprep.mubr.f32.mxu0 0.0
      %654 = vmatmul.mubr.f32.gmra.mrb[0].mxu0 %v542
      %v655 = vpop.f32.mrb[0].mxu0
      %v656 = vadd.f32 %v539, %v655
      %v657 = vpop.f32.mrb[0].mxu0
      %658 = vmatprep.mubr.f32.mxu0 0.0
      %659 = vmatmul.mubr.f32.gmra.mrb[0].mxu0 %v545
      %v660 = vpop.f32.mrb[0].mxu0
      %v661 = vadd.f32 %v539, %v660
      %v662 = vpop.f32.mrb[0].mxu0
      %663 = vmatprep.mubr.f32.mxu0 0.0
      %664 = vmatmul.mubr.f32.gmra.mrb[0].mxu0 %v548
      %v665 = vpop.f32.mrb[0].mxu0
      %v666 = vadd.f32 %v539, %v665
      %v667 = vpop.f32.mrb[0].mxu0
      %668 = vmatprep.mubr.f32.mxu0 0.0
      %669 = vmatmul.mubr.f32.gmra.mrb[0].mxu0 %v551
      %v670 = vpop.f32.mrb[0].mxu0
      %v671 = vadd.f32 %v539, %v670
      %v672 = vpop.f32.mrb[0].mxu0
      %673 = vmatprep.mubr.f32.mxu0 0.0
      %674 = vmatmul.mubr.f32.gmra.mrb[0].mxu0 %v554
      %v675 = vpop.f32.mrb[0].mxu0
      %v676 = vadd.f32 %v539, %v675
      %v677 = vpop.f32.mrb[0].mxu0
      %678 = vmatprep.mubr.f32.mxu0 0.0
      %679 = vmatmul.mubr.f32.gmra.mrb[0].mxu0 %v557
      %v680 = vpop.f32.mrb[0].mxu0
      %v681 = vadd.f32 %v539, %v680
      %v682 = vpop.f32.mrb[0].mxu0
      %683 = vmatprep.mubr.f32.mxu0 0.0
      %684 = vmatmul.mubr.f32.gmra.mrb[0].mxu0 %v560
      %v685 = vpop.f32.mrb[0].mxu0
      %v686 = vadd.f32 %v539, %v685
      %v687 = vpop.f32.mrb[0].mxu0
      %688 = vmatprep.mubr.f32.mxu0 0.0
      %689 = vmatmul.mubr.f32.gmra.mrb[0].mxu0 %v563
      %v690 = vpop.f32.mrb[0].mxu0
      %v691 = vadd.f32 %v539, %v690
      %v692 = vpop.f32.mrb[0].mxu0
      %693 = vmatprep.mubr.f32.mxu0 0.0
      %694 = vmatmul.mubr.f32.gmra.mrb[0].mxu0 %v566
      %v695 = vpop.f32.mrb[0].mxu0
      %v696 = vadd.f32 %v539, %v695
      %v697 = vpop.f32.mrb[0].mxu0
      %698 = vmatprep.mubr.f32.mxu0 0.0
      %699 = vmatmul.mubr.f32.gmra.mrb[0].mxu0 %v569
      %v700 = vpop.f32.mrb[0].mxu0
      %v701 = vadd.f32 %v539, %v700
      %v702 = vpop.f32.mrb[0].mxu0
      %703 = vmatprep.mubr.f32.mxu0 0.0
      %704 = vmatmul.mubr.f32.gmra.mrb[0].mxu0 %v572
      %v705 = vpop.f32.mrb[0].mxu0
      %v706 = vadd.f32 %v539, %v705
      %v707 = vpop.f32.mrb[0].mxu0
      %708 = vmatprep.mubr.f32.mxu0 0.0
      %709 = vmatmul.mubr.f32.gmra.mrb[0].mxu0 %v575
      %v710 = vpop.f32.mrb[0].mxu0
      %v711 = vadd.f32 %v539, %v710
      %v712 = vpop.f32.mrb[0].mxu0
      %713 = vmatprep.mubr.f32.mxu0 0.0
      %714 = vmatmul.mubr.f32.gmra.mrb[0].mxu0 %v578
      %v715 = vpop.f32.mrb[0].mxu0
      %v716 = vadd.f32 %v539, %v715
      %v717 = vpop.f32.mrb[0].mxu0
      %718 = vmatprep.mubr.f32.mxu0 0.0
      %719 = vmatmul.mubr.f32.gmra.mrb[0].mxu0 %v581
      %v720 = vpop.f32.mrb[0].mxu0
      %v721 = vadd.f32 %v539, %v720
      %v722 = vpop.f32.mrb[0].mxu0
      %723 = vmatprep.mubr.f32.mxu0 0.0
      %724 = vmatmul.mubr.f32.gmra.mrb[0].mxu0 %v584
      %v725 = vpop.f32.mrb[0].mxu0
      %v726 = vadd.f32 %v539, %v725
      %v727 = vpop.f32.mrb[0].mxu0
      %728 = vmatprep.mubr.f32.mxu0 0.0
      %729 = vmatmul.mubr.f32.gmra.mrb[0].mxu0 %v587
      %v730 = vpop.f32.mrb[0].mxu0
      %v731 = vadd.f32 %v539, %v730
      %v732 = vpop.f32.mrb[0].mxu0
      %733 = vdwg.mxu0
      %v734 = vld [vmem:[%s269] sm:$0xff]
      %v735 = vld [vmem:[%s269 + $0x8] sm:$0xff]
      %v736 = vld [vmem:[%s269 + $0x10] sm:$0xff]
      %v737 = vld [vmem:[%s269 + $0x18] sm:$0xff]
      %v738 = vld [vmem:[%s269 + $0x20] sm:$0xff]
      %v739 = vld [vmem:[%s269 + $0x28] sm:$0xff]
      %v740 = vld [vmem:[%s269 + $0x30] sm:$0xff]
      %v741 = vld [vmem:[%s269 + $0x38] sm:$0xff]
      %v742 = vld [vmem:[%s269 + $0x40] sm:$0xff]
      %v743 = vld [vmem:[%s269 + $0x48] sm:$0xff]
      %v744 = vld [vmem:[%s269 + $0x50] sm:$0xff]
      %v745 = vld [vmem:[%s269 + $0x58] sm:$0xff]
      %v746 = vld [vmem:[%s269 + $0x60] sm:$0xff]
      %v747 = vld [vmem:[%s269 + $0x68] sm:$0xff]
      %v748 = vld [vmem:[%s269 + $0x70] sm:$0xff]
      %v749 = vld [vmem:[%s269 + $0x78] sm:$0xff]
      %v750 = vmul.f32 %v656, 0.5
      %v751 = vmul.f32 %v661, 0.5
      %v752 = vmul.f32 %v666, 0.5
      %v753 = vmul.f32 %v671, 0.5
      %v754 = vmul.f32 %v676, 0.5
      %v755 = vmul.f32 %v681, 0.5
      %v756 = vmul.f32 %v686, 0.5
      %v757 = vmul.f32 %v691, 0.5
      %v758 = vmul.f32 %v696, 0.5
      %v759 = vmul.f32 %v701, 0.5
      %v760 = vmul.f32 %v706, 0.5
      %v761 = vmul.f32 %v711, 0.5
      %v762 = vmul.f32 %v716, 0.5
      %v763 = vmul.f32 %v721, 0.5
      %v764 = vmul.f32 %v726, 0.5
      %v765 = vmul.f32 %v731, 0.5
      %v766 = vmul.f32 %v750, 1.442695
      %v767 = vpow.pop %v766
      %v768 = vmul.f32 %v751, 1.442695
      %v769 = vpow.pop %v768
      %v770 = vmul.f32 %v752, 1.442695
      %v771 = vpow.pop %v770
      %v772 = vmul.f32 %v753, 1.442695
      %v773 = vpow.pop %v772
      %v774 = vmul.f32 %v754, 1.442695
      %v775 = vpow.pop %v774
      %v776 = vmul.f32 %v755, 1.442695
      %v777 = vpow.pop %v776
      %v778 = vmul.f32 %v756, 1.442695
      %v779 = vpow.pop %v778
      %v780 = vmul.f32 %v757, 1.442695
      %v781 = vpow.pop %v780
      %v782 = vmul.f32 %v758, 1.442695
      %v783 = vpow.pop %v782
      %v784 = vmul.f32 %v759, 1.442695
      %v785 = vpow.pop %v784
      %v786 = vmul.f32 %v760, 1.442695
      %v787 = vpow.pop %v786
      %v788 = vmul.f32 %v761, 1.442695
      %v789 = vpow.pop %v788
      %v790 = vmul.f32 %v762, 1.442695
      %v791 = vpow.pop %v790
      %v792 = vmul.f32 %v763, 1.442695
      %v793 = vpow.pop %v792
      %v794 = vmul.f32 %v764, 1.442695
      %v795 = vpow.pop %v794
      %v796 = vmul.f32 %v765, 1.442695
      %v797 = vpow.pop %v796
      %814 = vrot.lane.b32.xlu0 %v767, 120
      %v815 = vpop.permute.xlu0 %814
      %816 = vrot.lane.b32.xlu0 %v769, 120
      %v817 = vpop.permute.xlu0 %816
      %818 = vrot.lane.b32.xlu0 %v771, 120
      %v819 = vpop.permute.xlu0 %818
      %820 = vrot.lane.b32.xlu0 %v773, 120
      %v821 = vpop.permute.xlu0 %820
      %822 = vrot.lane.b32.xlu0 %v775, 120
      %v823 = vpop.permute.xlu0 %822
      %824 = vrot.lane.b32.xlu0 %v777, 120
      %v825 = vpop.permute.xlu0 %824
      %826 = vrot.lane.b32.xlu0 %v779, 120
      %v827 = vpop.permute.xlu0 %826
      %828 = vrot.lane.b32.xlu0 %v781, 120
      %v829 = vpop.permute.xlu0 %828
      %830 = vrot.lane.b32.xlu0 %v783, 120
      %v831 = vpop.permute.xlu0 %830
      %832 = vrot.lane.b32.xlu0 %v785, 120
      %v833 = vpop.permute.xlu0 %832
      %834 = vrot.lane.b32.xlu0 %v787, 120
      %v835 = vpop.permute.xlu0 %834
      %836 = vrot.lane.b32.xlu0 %v789, 120
      %v837 = vpop.permute.xlu0 %836
      %838 = vrot.lane.b32.xlu0 %v791, 120
      %v839 = vpop.permute.xlu0 %838
      %840 = vrot.lane.b32.xlu0 %v793, 120
      %v841 = vpop.permute.xlu0 %840
      %842 = vrot.lane.b32.xlu0 %v795, 120
      %v843 = vpop.permute.xlu0 %842
      %844 = vrot.lane.b32.xlu0 %v797, 120
      %v845 = vpop.permute.xlu0 %844
      %v862 = vmul.f32 %v734, %v815
      %v863 = vmul.f32 %v735, %v817
      %v864 = vmul.f32 %v736, %v819
      %v865 = vmul.f32 %v737, %v821
      %v866 = vmul.f32 %v738, %v823
      %v867 = vmul.f32 %v739, %v825
      %v868 = vmul.f32 %v740, %v827
      %v869 = vmul.f32 %v741, %v829
      %v870 = vmul.f32 %v742, %v831
      %v871 = vmul.f32 %v743, %v833
      %v872 = vmul.f32 %v744, %v835
      %v873 = vmul.f32 %v745, %v837
      %v874 = vmul.f32 %v746, %v839
      %v875 = vmul.f32 %v747, %v841
      %v876 = vmul.f32 %v748, %v843
      %v877 = vmul.f32 %v749, %v845
      %v878 = vadd.f32 %v656, %v862
      %v879 = vadd.f32 %v661, %v863
      %v880 = vadd.f32 %v666, %v864
      %v881 = vadd.f32 %v671, %v865
      %v882 = vadd.f32 %v676, %v866
      %v883 = vadd.f32 %v681, %v867
      %v884 = vadd.f32 %v686, %v868
      %v885 = vadd.f32 %v691, %v869
      %v886 = vadd.f32 %v696, %v870
      %v887 = vadd.f32 %v701, %v871
      %v888 = vadd.f32 %v706, %v872
      %v889 = vadd.f32 %v711, %v873
      %v890 = vadd.f32 %v716, %v874
      %v891 = vadd.f32 %v721, %v875
      %v892 = vadd.f32 %v726, %v876
      %v893 = vadd.f32 %v731, %v877
      %vm894 = vcmask 130048
      %895 = vst.msk [vmem:[%s275] sm:$0xff] %vm894, %v656
      %896 = vst.msk [vmem:[%s275 + $0x8] sm:$0xff] %vm894, %v661
      %897 = vst.msk [vmem:[%s275 + $0x10] sm:$0xff] %vm894, %v666
      %898 = vst.msk [vmem:[%s275 + $0x18] sm:$0xff] %vm894, %v671
      %899 = vst.msk [vmem:[%s275 + $0x20] sm:$0xff] %vm894, %v676
      %900 = vst.msk [vmem:[%s275 + $0x28] sm:$0xff] %vm894, %v681
      %901 = vst.msk [vmem:[%s275 + $0x30] sm:$0xff] %vm894, %v686
      %902 = vst.msk [vmem:[%s275 + $0x38] sm:$0xff] %vm894, %v691
      %903 = vst.msk [vmem:[%s275 + $0x40] sm:$0xff] %vm894, %v696
      %904 = vst.msk [vmem:[%s275 + $0x48] sm:$0xff] %vm894, %v701
      %905 = vst.msk [vmem:[%s275 + $0x50] sm:$0xff] %vm894, %v706
      %906 = vst.msk [vmem:[%s275 + $0x58] sm:$0xff] %vm894, %v711
      %907 = vst.msk [vmem:[%s275 + $0x60] sm:$0xff] %vm894, %v716
      %908 = vst.msk [vmem:[%s275 + $0x68] sm:$0xff] %vm894, %v721
      %909 = vst.msk [vmem:[%s275 + $0x70] sm:$0xff] %vm894, %v726
      %910 = vst.msk [vmem:[%s275 + $0x78] sm:$0xff] %vm894, %v731
      %927 = vrot.lane.b32.xlu0 %v878, 16
      %v928 = vpop.permute.xlu0 %927
      %929 = vrot.lane.b32.xlu0 %v879, 16
      %v930 = vpop.permute.xlu0 %929
      %931 = vrot.lane.b32.xlu0 %v880, 16
      %v932 = vpop.permute.xlu0 %931
      %933 = vrot.lane.b32.xlu0 %v881, 16
      %v934 = vpop.permute.xlu0 %933
      %935 = vrot.lane.b32.xlu0 %v882, 16
      %v936 = vpop.permute.xlu0 %935
      %937 = vrot.lane.b32.xlu0 %v883, 16
      %v938 = vpop.permute.xlu0 %937
      %939 = vrot.lane.b32.xlu0 %v884, 16
      %v940 = vpop.permute.xlu0 %939
      %941 = vrot.lane.b32.xlu0 %v885, 16
      %v942 = vpop.permute.xlu0 %941
      %943 = vrot.lane.b32.xlu0 %v886, 16
      %v944 = vpop.permute.xlu0 %943
      %945 = vrot.lane.b32.xlu0 %v887, 16
      %v946 = vpop.permute.xlu0 %945
      %947 = vrot.lane.b32.xlu0 %v888, 16
      %v948 = vpop.permute.xlu0 %947
      %949 = vrot.lane.b32.xlu0 %v889, 16
      %v950 = vpop.permute.xlu0 %949
      %951 = vrot.lane.b32.xlu0 %v890, 16
      %v952 = vpop.permute.xlu0 %951
      %953 = vrot.lane.b32.xlu0 %v891, 16
      %v954 = vpop.permute.xlu0 %953
      %955 = vrot.lane.b32.xlu0 %v892, 16
      %v956 = vpop.permute.xlu0 %955
      %957 = vrot.lane.b32.xlu0 %v893, 16
      %v958 = vpop.permute.xlu0 %957
      %vm975 = vcmask 195712
      %976 = vst.msk [vmem:[%s275] sm:$0xff] %vm975, %v928
      %977 = vst.msk [vmem:[%s275 + $0x8] sm:$0xff] %vm975, %v930
      %978 = vst.msk [vmem:[%s275 + $0x10] sm:$0xff] %vm975, %v932
      %979 = vst.msk [vmem:[%s275 + $0x18] sm:$0xff] %vm975, %v934
      %980 = vst.msk [vmem:[%s275 + $0x20] sm:$0xff] %vm975, %v936
      %981 = vst.msk [vmem:[%s275 + $0x28] sm:$0xff] %vm975, %v938
      %982 = vst.msk [vmem:[%s275 + $0x30] sm:$0xff] %vm975, %v940
      %983 = vst.msk [vmem:[%s275 + $0x38] sm:$0xff] %vm975, %v942
      %984 = vst.msk [vmem:[%s275 + $0x40] sm:$0xff] %vm975, %v944
      %985 = vst.msk [vmem:[%s275 + $0x48] sm:$0xff] %vm975, %v946
      %986 = vst.msk [vmem:[%s275 + $0x50] sm:$0xff] %vm975, %v948
      %987 = vst.msk [vmem:[%s275 + $0x58] sm:$0xff] %vm975, %v950
      %988 = vst.msk [vmem:[%s275 + $0x60] sm:$0xff] %vm975, %v952
      %989 = vst.msk [vmem:[%s275 + $0x68] sm:$0xff] %vm975, %v954
      %990 = vst.msk [vmem:[%s275 + $0x70] sm:$0xff] %vm975, %v956
      %991 = vst.msk [vmem:[%s275 + $0x78] sm:$0xff] %vm975, %v958
      %s992 = smul.u32 16, %s17
      %p993 = scmp.lt.s32.totalorder %s992, 31
      %s994 = scalar_select %p993, %s992, 31
      %s995 = smul.addr %s994, 8
      %s996 = scalar_lea.vmem %s6, %s995
      // Predicated region
      $region45: #{tpu_custom_call.1} parent=43 // pred_check
        %p997 = pneg %p171
      $region46: #{tpu_custom_call.1} parent=43 // pred_check_branch
        %999 = sbr.rel (%p997) target = $region48
      $region47: #{tpu_custom_call.1} parent=43 // pred_region
        %s1000 = smul.u32 16, %s17
      $region48: #{tpu_custom_call.1} parent=43 // pred_fallthru
        _
    $region44: #{tpu_custom_call.1} parent=5 // pred_fallthru
      _
    %p1001 = scmp.le.s32.totalorder 2, %s12
    // Predicated region
    $region49: #{tpu_custom_call.1} parent=5 // pred_check
      %p1002 = pneg %p1001
    $region50: #{tpu_custom_call.1} parent=5 // pred_check_branch
      %1004 = sbr.rel (%p1002) target = $region52
    $region51: #{tpu_custom_call.1} parent=5 // pred_region
      %s1005 = ssub.s32 %s12, 2
      // Predicated region
      $region53: #{tpu_custom_call.1} parent=51 // pred_check
        %p1006 = pneg %p177
      $region54: #{tpu_custom_call.1} parent=51 // pred_check_branch
        %1008 = sbr.rel (%p1006) target = $region56
      $region55: #{tpu_custom_call.1} parent=51 // pred_region
        %s1009 = smul.u32 16, %s18
        %p1010 = scmp.lt.s32.totalorder %s1009, 31
        %s1011 = scalar_select %p1010, %s1009, 31
        %s1012 = smul.addr %s1011, 8
        %s1013 = scalar_lea.vmem %s6, %s1012
      $region56: #{tpu_custom_call.1} parent=51 // pred_fallthru
        _
    $region52: #{tpu_custom_call.1} parent=5 // pred_fallthru
      _
  $region6: #{tpu_custom_call.1} parent=0 // loop_footer
    %s16 = sadd.s32 1, %s12
  $region7: #{tpu_custom_call.1} parent=0 // loop_footer_branch
    %11 = sbr.rel target = $region3
  $region8: #{tpu_custom_call.1} parent=0 // loop_exit
    _

</llo_original>
